<compile_context>
chip_gen: v6e
topology: v6e:2x2x1
jax: 0.10.0
libtpu: 0.0.40
codegen_flags: <defaults>
</compile_context>

<pallas_src>
import jax
import jax.numpy as jnp
from jax.experimental import pallas as pl
from jax.experimental.pallas import tpu as pltpu


def _decoder_loss_kernel(x_ref, sgn_ref,
                         wc_ref, bc_ref,
                         w3_ref, b3_ref,
                         wd_ref, bd_ref,
                         out_ref):
    w_dt = wc_ref.dtype                              # f32 or bf16 (MXU operands)
    x = x_ref[...]                                   # (TB, P*2N), same dtype as weights

    # fc1 + fc2 fused into one affine map (no activation between them).
    h = jnp.tanh(jnp.dot(x, wc_ref[...],
                         preferred_element_type=jnp.float32) + bc_ref[...])
    # fc3 + tanh  (activation cast to weight dtype only for the MXU operand;
    # elementwise math stays f32 — safe on v5e, native bf16 MXU on v6e/v7x).
    h = jnp.tanh(jnp.dot(h.astype(w_dt), w3_ref[...],
                         preferred_element_type=jnp.float32) + b3_ref[...])
    # fc4 collapsed to logit differences d = l1 - l0, shape (TB, P*K).
    d = jnp.dot(h.astype(w_dt), wd_ref[...],
                preferred_element_type=jnp.float32) + bd_ref[...]

    # Pairwise 2-class cross entropy == softplus((1 - 2*m) * d), stable form.
    z = sgn_ref[...].astype(jnp.float32) * d
    loss_elems = jnp.maximum(z, 0.0) + jnp.log(1.0 + jnp.exp(-jnp.abs(z)))

    partial = jnp.sum(loss_elems, keepdims=True)     # (1, 1)
    # Lane-dense, unmasked store of this tile's partial sum.
    out_ref[...] = jnp.broadcast_to(partial, out_ref.shape)  # (8, 128)


def decoder_loss(c_noisy, m_bits, params, *, tile_rows=None, use_bf16=False):
    """Scalar CE loss matching Decoder.forward(c_noisy, m)."""
    B, two_n = c_noisy.shape
    _, K = m_bits.shape
    (w1, b1), (w2, b2), (w3, b3), (w4, b4) = params

    # ---- exact algebraic fusions (all in f32) ----------------------------
    # PyTorch Linear: y = x @ W.T + b  (W is (out, in)).
    wc = w1.T @ w2.T                                  # (2N, 2N)   fc1 ∘ fc2
    bc = (b1 @ w2.T + b2).reshape(1, two_n)
    w3t = w3.T                                        # (2N, 2N)
    b3r = b3.reshape(1, two_n)
    w4t = w4.T                                        # (2N, 2K)
    wd = w4t[:, 1::2] - w4t[:, 0::2]                  # (2N, K)    l1 - l0
    bd = (b4[1::2] - b4[0::2]).reshape(1, K)
    sgn = (1.0 - 2.0 * m_bits).astype(jnp.float32)    # (B, K) in {-1, +1}

    # ---- lane packing: P batch rows per 128-lane vreg row -----------------
    if two_n <= 128 and 128 % two_n == 0:
        P = 128 // two_n
        while P > 1 and B % P != 0:
            P //= 2
    else:
        P = 1
    Bp = B // P
    fc = P * two_n                                    # packed feature width (128 here)
    kc = P * K                                        # packed logit-diff width

    mxu_dtype = jnp.bfloat16 if use_bf16 else jnp.float32
    eye_p = jnp.eye(P, dtype=jnp.float32)
    # Fuse in f32 first, cast the fused block-diagonal matrices afterwards.
    wc_b = jnp.kron(eye_p, wc).astype(mxu_dtype)      # (fc, fc)
    w3_b = jnp.kron(eye_p, w3t).astype(mxu_dtype)     # (fc, fc)
    wd_b = jnp.kron(eye_p, wd).astype(mxu_dtype)      # (fc, kc)
    bc_b = jnp.tile(bc, (1, P))                       # biases stay f32 (post-MXU add)
    b3_b = jnp.tile(b3r, (1, P))
    bd_b = jnp.tile(bd, (1, P))

    x_p = c_noisy.reshape(Bp, fc).astype(mxu_dtype)   # halves the dominant HBM stream
    sgn_p = sgn.reshape(Bp, kc).astype(mxu_dtype)     # +/-1 exact in bf16

    # ---- batch tiling ------------------------------------------------------
    if tile_rows is None:
        cap = 2048                                    # packed rows (~8192 orig @ P=4), ~2 MiB/buf
        if Bp <= cap:
            tile_rows = Bp                            # whole batch, grid=(1,)
            if Bp >= 1024 and Bp % 16 == 0:
                tile_rows = Bp // 2                   # give v7x's 2nd TensorCore a tile
        else:
            tile_rows = cap
            while tile_rows > 8 and Bp % tile_rows:
                tile_rows //= 2
    # TODO(synk): add a remainder-tile / padding path for batch sizes that do
    # not divide evenly.
    assert Bp % tile_rows == 0, "pad the batch or pass a divisor tile_rows"
    num_tiles = Bp // tile_rows

    full = lambda i: (0, 0)
    itemsize = 2 if use_bf16 else 4
    cost = pl.CostEstimate(
        flops=2 * B * two_n * (2 * two_n + K),
        transcendentals=2 * B * two_n + B * K,
        bytes_accessed=int((x_p.size + sgn_p.size
                            + wc_b.size + w3_b.size + wd_b.size) * itemsize
                           + (bc_b.size + b3_b.size + bd_b.size) * 4
                           + num_tiles * 8 * 128 * 4),
    )

    partials = pl.pallas_call(
        _decoder_loss_kernel,
        out_shape=jax.ShapeDtypeStruct((num_tiles * 8, 128), jnp.float32),
        grid_spec=pltpu.PrefetchScalarGridSpec(
            num_scalar_prefetch=0,
            grid=(num_tiles,),
            in_specs=[
                pl.BlockSpec((tile_rows, fc), lambda i: (i, 0)),  # packed inputs
                pl.BlockSpec((tile_rows, kc), lambda i: (i, 0)),  # packed signs
                pl.BlockSpec((fc, fc), full),                     # Wc  (fc1∘fc2, blockdiag)
                pl.BlockSpec((1, fc), full),                      # bc
                pl.BlockSpec((fc, fc), full),                     # W3.T (blockdiag)
                pl.BlockSpec((1, fc), full),                      # b3
                pl.BlockSpec((fc, kc), full),                     # Wd  (logit diff, blockdiag)
                pl.BlockSpec((1, kc), full),                      # bd
            ],
            out_specs=pl.BlockSpec((8, 128), lambda i: (i, 0)),
        ),
        compiler_params=pltpu.CompilerParams(
            dimension_semantics=("parallel",)),
        cost_estimate=cost,
    )(x_p, sgn_p, wc_b, bc_b, w3_b, b3_b, wd_b, bd_b)

    # One value per tile (block rows are identical); reduce + normalize here.
    per_tile = partials[::8, 0]                       # (num_tiles,)
    return jnp.sum(per_tile) / jnp.float32(B * K)


def init_params(key, K, N):
    """Deterministic init mimicking nn.Linear default (uniform +/- 1/sqrt(fan_in))."""
    two_n = 2 * N
    dims = [(two_n, two_n), (two_n, two_n), (two_n, two_n), (2 * K, two_n)]  # (out, in)
    params = []
    for out_f, in_f in dims:
        key, kw, kb = jax.random.split(key, 3)
        bound = 1.0 / jnp.sqrt(in_f)
        w = jax.random.uniform(kw, (out_f, in_f), jnp.float32, -bound, bound)
        b = jax.random.uniform(kb, (out_f,), jnp.float32, -bound, bound)
        params.append((w, b))
    return params


def reference_loss(c_noisy, m_bits, params):
    """Pure-JAX reference reproducing the PyTorch forward exactly (unfused)."""
    (w1, b1), (w2, b2), (w3, b3), (w4, b4) = params
    h = c_noisy @ w1.T + b1
    h = h @ w2.T + b2
    h = jnp.tanh(h)
    h = h @ w3.T + b3
    h = jnp.tanh(h)
    logits = h @ w4.T + b4                         # (B, 2K)
    logits = logits.reshape(-1, 2)                 # (B*K, 2)
    target = m_bits.reshape(-1).astype(jnp.int32)  # (B*K,)
    logz = jax.nn.logsumexp(logits, axis=-1)
    picked = jnp.take_along_axis(logits, target[:, None], axis=-1)[:, 0]
    return jnp.mean(logz - picked)


if __name__ == "__main__":
    K, N = 8, 16          # Decoder(K, N): hidden width 2N = 32, output width 2K = 16
    B = 16                # batch of codewords

    key = jax.random.PRNGKey(0)
    k_params, k_c, k_m = jax.random.split(key, 3)

    params = init_params(k_params, K, N)
    c_noisy = jax.random.normal(k_c, (B, 2 * N), jnp.float32)
    m = jax.random.bernoulli(k_m, 0.5, (B, K)).astype(jnp.float32)

    ref = reference_loss(c_noisy, m, params)

    # f32 path: must match the f32 reference tightly.
    loss = jax.block_until_ready(decoder_loss(c_noisy, m, params))
    assert jnp.allclose(loss, ref, rtol=1e-5, atol=1e-5), (loss, ref)

    # bf16 MXU/stream path (v6e/v7x recipe; elementwise math stays f32): looser tolerance.
    loss_bf16 = jax.block_until_ready(decoder_loss(c_noisy, m, params, use_bf16=True))
    assert jnp.allclose(loss_bf16, ref, rtol=5e-2, atol=5e-2), (loss_bf16, ref)

    print("KERNEL_OK")
</pallas_src>

<mosaic_0001>
module attributes {stable_mosaic.version = 11 : i64} {
  func.func @_decoder_loss_kernel(%arg0: i32, %arg1: memref<4x128xf32, #tpu.memory_space<vmem>>, %arg2: memref<4x32xf32, #tpu.memory_space<vmem>>, %arg3: memref<128x128xf32, #tpu.memory_space<vmem>>, %arg4: memref<1x128xf32, #tpu.memory_space<vmem>>, %arg5: memref<128x128xf32, #tpu.memory_space<vmem>>, %arg6: memref<1x128xf32, #tpu.memory_space<vmem>>, %arg7: memref<128x32xf32, #tpu.memory_space<vmem>>, %arg8: memref<1x32xf32, #tpu.memory_space<vmem>>, %arg9: memref<8x128xf32, #tpu.memory_space<vmem>>) attributes {dimension_semantics = [#tpu.dimension_semantics<parallel>], iteration_bounds = array<i64: 1>, scalar_prefetch = 0 : i64, scratch_operands = 0 : i64, tpu.core_type = #tpu.core_type<tc>, window_params = [{transform_indices = @transform_0, window_bounds = array<i64: 4, 128>}, {transform_indices = @transform_1, window_bounds = array<i64: 4, 32>}, {pipeline_mode = #tpu.pipeline_mode<synchronous>, transform_indices = @transform_2, window_bounds = array<i64: 128, 128>}, {pipeline_mode = #tpu.pipeline_mode<synchronous>, transform_indices = @transform_3, window_bounds = array<i64: 1, 128>}, {pipeline_mode = #tpu.pipeline_mode<synchronous>, transform_indices = @transform_4, window_bounds = array<i64: 128, 128>}, {pipeline_mode = #tpu.pipeline_mode<synchronous>, transform_indices = @transform_5, window_bounds = array<i64: 1, 128>}, {pipeline_mode = #tpu.pipeline_mode<synchronous>, transform_indices = @transform_6, window_bounds = array<i64: 128, 32>}, {pipeline_mode = #tpu.pipeline_mode<synchronous>, transform_indices = @transform_7, window_bounds = array<i64: 1, 32>}, {transform_indices = @transform_8, window_bounds = array<i64: 8, 128>}]} {
    %c0 = arith.constant 0 : index
    %c0_0 = arith.constant 0 : index
    %0 = vector.load %arg1[%c0, %c0_0] : memref<4x128xf32, #tpu.memory_space<vmem>>, vector<4x128xf32>
    %c0_1 = arith.constant 0 : index
    %c0_2 = arith.constant 0 : index
    %1 = vector.load %arg3[%c0_1, %c0_2] : memref<128x128xf32, #tpu.memory_space<vmem>>, vector<128x128xf32>
    %cst = arith.constant dense<0.000000e+00> : vector<4x128xf32>
    %2 = tpu.matmul %0, %1, %cst {dimension_numbers = #tpu.dot_dimension_numbers<[1], [0], [0], [1], [0, 0, 1, 1], [], []>} : vector<4x128xf32>, vector<128x128xf32>, vector<4x128xf32> -> vector<4x128xf32>
    %c0_3 = arith.constant 0 : index
    %c0_4 = arith.constant 0 : index
    %3 = vector.load %arg4[%c0_3, %c0_4] : memref<1x128xf32, #tpu.memory_space<vmem>>, vector<1x128xf32>
    %4 = vector.broadcast %3 : vector<1x128xf32> to vector<4x128xf32>
    %5 = arith.addf %2, %4 : vector<4x128xf32>
    %6 = math.tanh %5 : vector<4x128xf32>
    %c0_5 = arith.constant 0 : index
    %c0_6 = arith.constant 0 : index
    %7 = vector.load %arg5[%c0_5, %c0_6] : memref<128x128xf32, #tpu.memory_space<vmem>>, vector<128x128xf32>
    %cst_7 = arith.constant dense<0.000000e+00> : vector<4x128xf32>
    %8 = tpu.matmul %6, %7, %cst_7 {dimension_numbers = #tpu.dot_dimension_numbers<[1], [0], [0], [1], [0, 0, 1, 1], [], []>} : vector<4x128xf32>, vector<128x128xf32>, vector<4x128xf32> -> vector<4x128xf32>
    %c0_8 = arith.constant 0 : index
    %c0_9 = arith.constant 0 : index
    %9 = vector.load %arg6[%c0_8, %c0_9] : memref<1x128xf32, #tpu.memory_space<vmem>>, vector<1x128xf32>
    %10 = vector.broadcast %9 : vector<1x128xf32> to vector<4x128xf32>
    %11 = arith.addf %8, %10 : vector<4x128xf32>
    %12 = math.tanh %11 : vector<4x128xf32>
    %c0_10 = arith.constant 0 : index
    %c0_11 = arith.constant 0 : index
    %13 = vector.load %arg7[%c0_10, %c0_11] : memref<128x32xf32, #tpu.memory_space<vmem>>, vector<128x32xf32>
    %cst_12 = arith.constant dense<0.000000e+00> : vector<4x32xf32>
    %14 = tpu.matmul %12, %13, %cst_12 {dimension_numbers = #tpu.dot_dimension_numbers<[1], [0], [0], [1], [0, 0, 1, 1], [], []>} : vector<4x128xf32>, vector<128x32xf32>, vector<4x32xf32> -> vector<4x32xf32>
    %c0_13 = arith.constant 0 : index
    %c0_14 = arith.constant 0 : index
    %15 = vector.load %arg8[%c0_13, %c0_14] : memref<1x32xf32, #tpu.memory_space<vmem>>, vector<1x32xf32>
    %16 = vector.broadcast %15 : vector<1x32xf32> to vector<4x32xf32>
    %17 = arith.addf %14, %16 : vector<4x32xf32>
    %c0_15 = arith.constant 0 : index
    %c0_16 = arith.constant 0 : index
    %18 = vector.load %arg2[%c0_15, %c0_16] : memref<4x32xf32, #tpu.memory_space<vmem>>, vector<4x32xf32>
    %19 = arith.mulf %18, %17 : vector<4x32xf32>
    %cst_17 = arith.constant 0.000000e+00 : f32
    %20 = vector.broadcast %cst_17 : f32 to vector<4x32xf32>
    %21 = arith.maximumf %19, %20 : vector<4x32xf32>
    %22 = math.absf %19 : vector<4x32xf32>
    %cst_18 = arith.constant 0.000000e+00 : f32
    %23 = vector.broadcast %cst_18 : f32 to vector<4x32xf32>
    %24 = arith.subf %23, %22 : vector<4x32xf32>
    %25 = math.exp %24 : vector<4x32xf32>
    %cst_19 = arith.constant 1.000000e+00 : f32
    %26 = vector.broadcast %cst_19 : f32 to vector<4x32xf32>
    %27 = arith.addf %26, %25 : vector<4x32xf32>
    %28 = math.log %27 : vector<4x32xf32>
    %29 = arith.addf %21, %28 : vector<4x32xf32>
    %30 = vector.shape_cast %29 : vector<4x32xf32> to vector<1x4x32xf32>
    %cst_20 = arith.constant dense<0.000000e+00> : vector<1xf32>
    %31 = vector.multi_reduction <add>, %30, %cst_20 [1, 2] : vector<1x4x32xf32> to vector<1xf32>
    %32 = vector.shape_cast %31 : vector<1xf32> to vector<1x1x1xf32>
    %33 = vector.extract %32[0, 0, 0] : f32 from vector<1x1x1xf32>
    %34 = vector.broadcast %33 : f32 to vector<1x1xf32>
    %35 = vector.shape_cast %34 : vector<1x1xf32> to vector<1x1xf32>
    %36 = vector.broadcast %35 : vector<1x1xf32> to vector<8x128xf32>
    %c0_21 = arith.constant 0 : index
    %c0_22 = arith.constant 0 : index
    %37 = vector.load %arg9[%c0_21, %c0_22] : memref<8x128xf32, #tpu.memory_space<vmem>>, vector<8x128xf32>
    tpu.vector_store %arg9[%c0_21, %c0_22], %36 {strides = array<i32>} : memref<8x128xf32, #tpu.memory_space<vmem>>, vector<8x128xf32>,
    return
  }
  func.func @transform_0(%arg0: i32) -> (i32, i32) {
    %c0_i32 = arith.constant 0 : i32
    %c0_i32_0 = arith.constant 0 : i32
    return %arg0, %c0_i32 : i32, i32
  }
  func.func @transform_1(%arg0: i32) -> (i32, i32) {
    %c0_i32 = arith.constant 0 : i32
    %c0_i32_0 = arith.constant 0 : i32
    return %arg0, %c0_i32 : i32, i32
  }
  func.func @transform_2(%arg0: i32) -> (i32, i32) {
    %c0_i32 = arith.constant 0 : i32
    %c0_i32_0 = arith.constant 0 : i32
    %c0_i32_1 = arith.constant 0 : i32
    return %c0_i32, %c0_i32_0 : i32, i32
  }
  func.func @transform_3(%arg0: i32) -> (i32, i32) {
    %c0_i32 = arith.constant 0 : i32
    %c0_i32_0 = arith.constant 0 : i32
    %c0_i32_1 = arith.constant 0 : i32
    return %c0_i32, %c0_i32_0 : i32, i32
  }
  func.func @transform_4(%arg0: i32) -> (i32, i32) {
    %c0_i32 = arith.constant 0 : i32
    %c0_i32_0 = arith.constant 0 : i32
    %c0_i32_1 = arith.constant 0 : i32
    return %c0_i32, %c0_i32_0 : i32, i32
  }
  func.func @transform_5(%arg0: i32) -> (i32, i32) {
    %c0_i32 = arith.constant 0 : i32
    %c0_i32_0 = arith.constant 0 : i32
    %c0_i32_1 = arith.constant 0 : i32
    return %c0_i32, %c0_i32_0 : i32, i32
  }
  func.func @transform_6(%arg0: i32) -> (i32, i32) {
    %c0_i32 = arith.constant 0 : i32
    %c0_i32_0 = arith.constant 0 : i32
    %c0_i32_1 = arith.constant 0 : i32
    return %c0_i32, %c0_i32_0 : i32, i32
  }
  func.func @transform_7(%arg0: i32) -> (i32, i32) {
    %c0_i32 = arith.constant 0 : i32
    %c0_i32_0 = arith.constant 0 : i32
    %c0_i32_1 = arith.constant 0 : i32
    return %c0_i32, %c0_i32_0 : i32, i32
  }
  func.func @transform_8(%arg0: i32) -> (i32, i32) {
    %c0_i32 = arith.constant 0 : i32
    %c0_i32_0 = arith.constant 0 : i32
    return %arg0, %c0_i32 : i32, i32
  }
}

</mosaic_0001>

<llo_original>
// kernel: tpu_custom_call.1
$region0: #{tpu_custom_call.1}
  #allocation0 [shape = 'u32[]', space=smem, size = 0x4, offset = 0x4, fixed_abs, tag = 'smem constant byte address 0x4 - core index']
  #allocation1 [shape = 'u32[144,128]{1,0:T(1,128)}', space=vmem, size = 0x12000, scoped, tag = 'internal scratch']
  %s0 = inlined_call_operand.vmem [shape: f32[4,128], index: 0, kind: input, shape index: {}]
  %s1 = inlined_call_operand.vmem [shape: f32[4,32], index: 1, kind: input, shape index: {}]
  %s2 = inlined_call_operand.vmem [shape: f32[128,128], index: 2, kind: input, shape index: {}]
  %s3 = inlined_call_operand.vmem [shape: f32[1,128], index: 3, kind: input, shape index: {}]
  %s4 = inlined_call_operand.hbm [shape: f32[128,128], index: 4, kind: input, shape index: {}]
  %s5 = inlined_call_operand.vmem [shape: f32[1,128], index: 5, kind: input, shape index: {}]
  %s6 = inlined_call_operand.vmem [shape: f32[128,32], index: 6, kind: input, shape index: {}]
  %s7 = inlined_call_operand.vmem [shape: f32[1,32], index: 7, kind: input, shape index: {}]
  %s8 = inlined_call_operand.hbm [shape: f32[8,128], index: 8, kind: output, shape index: {}]
  %s9 = sld [smem:[#allocation0]]
  $region46: #{tpu_custom_call.1} parent=0
    _
  %s11 = ssub.s32 1, %s9
  %s12 = scalar_select 0, %s11, %s9
  $region1: #{tpu_custom_call.1} parent=0
    #allocation2 [shape = 'u8[65536]{0}', space=vmem, size = 0x10000, scoped, tag = 'input window, operand 4, single buffered']
    #allocation3 [shape = 's32[1]{0}', space=sflag, size = 0x4, scoped, tag = 'scoped memory for tpu_custom_call.1']
    #allocation4 [shape = 's32[1]{0}', space=sflag, size = 0x4, scoped, tag = 'scoped memory for tpu_custom_call.1']
    #allocation5 [shape = 'u8[4096]{0}', space=vmem, size = 0x1000, scoped, tag = 'output window, operand 0, single buffered']
    %13 = vsyncpa [#allocation3], 0
    %14 = vsyncpa [#allocation4], 0
    // Predicated region
    $region2: #{tpu_custom_call.1} parent=1 // pred_check
      _
    $region3: #{tpu_custom_call.1} parent=1 // pred_check_branch
      %16 = sbr.rel (0) target = $region5
    $region4: #{tpu_custom_call.1} parent=1 // pred_region
      _
    $region5: #{tpu_custom_call.1} parent=1 // pred_fallthru
      _
    // Predicated region
    $region6: #{tpu_custom_call.1} parent=1 // pred_check
      _
    $region7: #{tpu_custom_call.1} parent=1 // pred_check_branch
      %18 = sbr.rel (0) target = $region9
    $region8: #{tpu_custom_call.1} parent=1 // pred_region
      _
    $region9: #{tpu_custom_call.1} parent=1 // pred_fallthru
      _
    // Predicated region
    $region10: #{tpu_custom_call.1} parent=1 // pred_check
      _
    $region11: #{tpu_custom_call.1} parent=1 // pred_check_branch
      %20 = sbr.rel (0) target = $region13
    $region12: #{tpu_custom_call.1} parent=1 // pred_region
      _
    $region13: #{tpu_custom_call.1} parent=1 // pred_fallthru
      _
    // Predicated region
    $region14: #{tpu_custom_call.1} parent=1 // pred_check
      _
    $region15: #{tpu_custom_call.1} parent=1 // pred_check_branch
      %22 = sbr.rel (0) target = $region17
    $region16: #{tpu_custom_call.1} parent=1 // pred_region
      _
    $region17: #{tpu_custom_call.1} parent=1 // pred_fallthru
      _
    // Predicated region
    $region18: #{tpu_custom_call.1} parent=1 // pred_check
      _
    $region19: #{tpu_custom_call.1} parent=1 // pred_check_branch
      %24 = sbr.rel (0) target = $region21
    $region20: #{tpu_custom_call.1} parent=1 // pred_region
      %s26 = ssub.s32 2048, 2048
      %27 = vsyncadd [#allocation3], %s26
      %s28 = sshll.u32 [#allocation2], 4
      %s29 = int_to_ptr.vmem [resolvable:$true] %s28
      %34 = dma.hbm_to_vmem [thread:$0]  %s4, 2048, %s29, [#allocation3], 128, 128, 8
    $region21: #{tpu_custom_call.1} parent=1 // pred_fallthru
      _
    // Predicated region
    $region22: #{tpu_custom_call.1} parent=1 // pred_check
      _
    $region23: #{tpu_custom_call.1} parent=1 // pred_check_branch
      %36 = sbr.rel (0) target = $region25
    $region24: #{tpu_custom_call.1} parent=1 // pred_region
      _
    $region25: #{tpu_custom_call.1} parent=1 // pred_fallthru
      _
    // Predicated region
    $region26: #{tpu_custom_call.1} parent=1 // pred_check
      _
    $region27: #{tpu_custom_call.1} parent=1 // pred_check_branch
      %38 = sbr.rel (0) target = $region29
    $region28: #{tpu_custom_call.1} parent=1 // pred_region
      _
    $region29: #{tpu_custom_call.1} parent=1 // pred_fallthru
      _
    // Predicated region
    $region30: #{tpu_custom_call.1} parent=1 // pred_check
      _
    $region31: #{tpu_custom_call.1} parent=1 // pred_check_branch
      %40 = sbr.rel (0) target = $region33
    $region32: #{tpu_custom_call.1} parent=1 // pred_region
      _
    $region33: #{tpu_custom_call.1} parent=1 // pred_fallthru
      _
    // Predicated region
    $region34: #{tpu_custom_call.1} parent=1 // pred_check
      _
    $region35: #{tpu_custom_call.1} parent=1 // pred_check_branch
      %42 = sbr.rel (0) target = $region37
    $region36: #{tpu_custom_call.1} parent=1 // pred_region
      %43 = dma.done [#allocation3], 2048
    $region37: #{tpu_custom_call.1} parent=1 // pred_fallthru
      _
    %v44 = vld [vmem:[%s0] sm:$0xf]
    %v45 = vld [vmem:[%s2] sm:$0xff]
    %v46 = vld [vmem:[%s2 + $0x8] sm:$0xff]
    %v47 = vld [vmem:[%s2 + $0x10] sm:$0xff]
    %v48 = vld [vmem:[%s2 + $0x18] sm:$0xff]
    %v49 = vld [vmem:[%s2 + $0x20] sm:$0xff]
    %v50 = vld [vmem:[%s2 + $0x28] sm:$0xff]
    %v51 = vld [vmem:[%s2 + $0x30] sm:$0xff]
    %v52 = vld [vmem:[%s2 + $0x38] sm:$0xff]
    %v53 = vld [vmem:[%s2 + $0x40] sm:$0xff]
    %v54 = vld [vmem:[%s2 + $0x48] sm:$0xff]
    %v55 = vld [vmem:[%s2 + $0x50] sm:$0xff]
    %v56 = vld [vmem:[%s2 + $0x58] sm:$0xff]
    %v57 = vld [vmem:[%s2 + $0x60] sm:$0xff]
    %v58 = vld [vmem:[%s2 + $0x68] sm:$0xff]
    %v59 = vld [vmem:[%s2 + $0x70] sm:$0xff]
    %v60 = vld [vmem:[%s2 + $0x78] sm:$0xff]
    %v61 = vld [vmem:[%s3] sm:$0x1]
    %v63 = vlaneseq
    %v64 = vshrl.u32 %v63, 7
    %v65 = vsub.s32 0, %v64
    %v66 = vrot.slane %v61, %v65
    %68 = vmatprep.subr.mxu0 0.0
    %69 = vmatpush1.msra.mxu0 %v60
    %70 = vmatprep.subr.mxu0 0.0
    %71 = vmatpush1.msra.mxu0 %v59
    %72 = vmatprep.subr.mxu0 0.0
    %73 = vmatpush1.msra.mxu0 %v58
    %74 = vmatprep.subr.mxu0 0.0
    %75 = vmatpush1.msra.mxu0 %v57
    %76 = vmatprep.subr.mxu0 0.0
    %77 = vmatpush1.msra.mxu0 %v56
    %78 = vmatprep.subr.mxu0 0.0
    %79 = vmatpush1.msra.mxu0 %v55
    %80 = vmatprep.subr.mxu0 0.0
    %81 = vmatpush1.msra.mxu0 %v54
    %82 = vmatprep.subr.mxu0 0.0
    %83 = vmatpush1.msra.mxu0 %v53
    %84 = vmatprep.subr.mxu0 0.0
    %85 = vmatpush1.msra.mxu0 %v52
    %86 = vmatprep.subr.mxu0 0.0
    %87 = vmatpush1.msra.mxu0 %v51
    %88 = vmatprep.subr.mxu0 0.0
    %89 = vmatpush1.msra.mxu0 %v50
    %90 = vmatprep.subr.mxu0 0.0
    %91 = vmatpush1.msra.mxu0 %v49
    %92 = vmatprep.subr.mxu0 0.0
    %93 = vmatpush1.msra.mxu0 %v48
    %94 = vmatprep.subr.mxu0 0.0
    %95 = vmatpush1.msra.mxu0 %v47
    %96 = vmatprep.subr.mxu0 0.0
    %97 = vmatpush1.msra.mxu0 %v46
    %98 = vmatprep.subr.mxu0 0.0
    %99 = vmatpush1.msra.mxu0 %v45
    %100 = vmatprep.subr.mxu0 0.0
    %101 = vmatpush2.msra.mxu0 0.0
    %102 = vmatprep.subr.mxu0 0.0
    %103 = vmatpush2.msra.mxu0 0.0
    %104 = vmatprep.subr.mxu0 0.0
    %105 = vmatpush2.msra.mxu0 0.0
    %106 = vmatprep.subr.mxu0 0.0
    %107 = vmatpush2.msra.mxu0 0.0
    %108 = vmatprep.subr.mxu0 0.0
    %109 = vmatpush2.msra.mxu0 0.0
    %110 = vmatprep.subr.mxu0 0.0
    %111 = vmatpush2.msra.mxu0 0.0
    %112 = vmatprep.subr.mxu0 0.0
    %113 = vmatpush2.msra.mxu0 0.0
    %114 = vmatprep.subr.mxu0 0.0
    %115 = vmatpush2.msra.mxu0 0.0
    %116 = vmatprep.subr.mxu0 0.0
    %117 = vmatpush2.msra.mxu0 0.0
    %118 = vmatprep.subr.mxu0 0.0
    %119 = vmatpush2.msra.mxu0 0.0
    %120 = vmatprep.subr.mxu0 0.0
    %121 = vmatpush2.msra.mxu0 0.0
    %122 = vmatprep.subr.mxu0 0.0
    %123 = vmatpush2.msra.mxu0 0.0
    %124 = vmatprep.subr.mxu0 0.0
    %125 = vmatpush2.msra.mxu0 0.0
    %126 = vmatprep.subr.mxu0 0.0
    %127 = vmatpush2.msra.mxu0 0.0
    %128 = vmatprep.subr.mxu0 0.0
    %129 = vmatpush2.msra.mxu0 0.0
    %130 = vmatprep.subr.mxu0 0.0
    %131 = vmatpush2.msra.mxu0 0.0
    %132 = vmatprep.mubr.f32.mxu0 0.0
    %133 = vmatmul.mubr.f32.gmra.mxu0 %v44
    %v134 = vpop.f32.mrf.mxu0
    %v135 = vadd.f32 %v66, %v134
    %v136 = vpop.f32.mrf.mxu0
    %137 = vdwg.mxu0
    %v138 = vtanh.pop %v135
    %v139 = vld [vmem:[#allocation2] sm:$0xff]
    %v140 = vld [vmem:[#allocation2 + $0x8] sm:$0xff]
    %v141 = vld [vmem:[#allocation2 + $0x10] sm:$0xff]
    %v142 = vld [vmem:[#allocation2 + $0x18] sm:$0xff]
    %v143 = vld [vmem:[#allocation2 + $0x20] sm:$0xff]
    %v144 = vld [vmem:[#allocation2 + $0x28] sm:$0xff]
    %v145 = vld [vmem:[#allocation2 + $0x30] sm:$0xff]
    %v146 = vld [vmem:[#allocation2 + $0x38] sm:$0xff]
    %v147 = vld [vmem:[#allocation2 + $0x40] sm:$0xff]
    %v148 = vld [vmem:[#allocation2 + $0x48] sm:$0xff]
    %v149 = vld [vmem:[#allocation2 + $0x50] sm:$0xff]
    %v150 = vld [vmem:[#allocation2 + $0x58] sm:$0xff]
    %v151 = vld [vmem:[#allocation2 + $0x60] sm:$0xff]
    %v152 = vld [vmem:[#allocation2 + $0x68] sm:$0xff]
    %v153 = vld [vmem:[#allocation2 + $0x70] sm:$0xff]
    %v154 = vld [vmem:[#allocation2 + $0x78] sm:$0xff]
    %v155 = vld [vmem:[%s5] sm:$0x1]
    %v157 = vlaneseq
    %v158 = vshrl.u32 %v157, 7
    %v159 = vsub.s32 0, %v158
    %v160 = vrot.slane %v155, %v159
    %162 = vmatprep.subr.mxu0 0.0
    %163 = vmatpush1.msra.mxu0 %v154
    %164 = vmatprep.subr.mxu0 0.0
    %165 = vmatpush1.msra.mxu0 %v153
    %166 = vmatprep.subr.mxu0 0.0
    %167 = vmatpush1.msra.mxu0 %v152
    %168 = vmatprep.subr.mxu0 0.0
    %169 = vmatpush1.msra.mxu0 %v151
    %170 = vmatprep.subr.mxu0 0.0
    %171 = vmatpush1.msra.mxu0 %v150
    %172 = vmatprep.subr.mxu0 0.0
    %173 = vmatpush1.msra.mxu0 %v149
    %174 = vmatprep.subr.mxu0 0.0
    %175 = vmatpush1.msra.mxu0 %v148
    %176 = vmatprep.subr.mxu0 0.0
    %177 = vmatpush1.msra.mxu0 %v147
    %178 = vmatprep.subr.mxu0 0.0
    %179 = vmatpush1.msra.mxu0 %v146
    %180 = vmatprep.subr.mxu0 0.0
    %181 = vmatpush1.msra.mxu0 %v145
    %182 = vmatprep.subr.mxu0 0.0
    %183 = vmatpush1.msra.mxu0 %v144
    %184 = vmatprep.subr.mxu0 0.0
    %185 = vmatpush1.msra.mxu0 %v143
    %186 = vmatprep.subr.mxu0 0.0
    %187 = vmatpush1.msra.mxu0 %v142
    %188 = vmatprep.subr.mxu0 0.0
    %189 = vmatpush1.msra.mxu0 %v141
    %190 = vmatprep.subr.mxu0 0.0
    %191 = vmatpush1.msra.mxu0 %v140
    %192 = vmatprep.subr.mxu0 0.0
    %193 = vmatpush1.msra.mxu0 %v139
    %194 = vmatprep.subr.mxu0 0.0
    %195 = vmatpush2.msra.mxu0 0.0
    %196 = vmatprep.subr.mxu0 0.0
    %197 = vmatpush2.msra.mxu0 0.0
    %198 = vmatprep.subr.mxu0 0.0
    %199 = vmatpush2.msra.mxu0 0.0
    %200 = vmatprep.subr.mxu0 0.0
    %201 = vmatpush2.msra.mxu0 0.0
    %202 = vmatprep.subr.mxu0 0.0
    %203 = vmatpush2.msra.mxu0 0.0
    %204 = vmatprep.subr.mxu0 0.0
    %205 = vmatpush2.msra.mxu0 0.0
    %206 = vmatprep.subr.mxu0 0.0
    %207 = vmatpush2.msra.mxu0 0.0
    %208 = vmatprep.subr.mxu0 0.0
    %209 = vmatpush2.msra.mxu0 0.0
    %210 = vmatprep.subr.mxu0 0.0
    %211 = vmatpush2.msra.mxu0 0.0
    %212 = vmatprep.subr.mxu0 0.0
    %213 = vmatpush2.msra.mxu0 0.0
    %214 = vmatprep.subr.mxu0 0.0
    %215 = vmatpush2.msra.mxu0 0.0
    %216 = vmatprep.subr.mxu0 0.0
    %217 = vmatpush2.msra.mxu0 0.0
    %218 = vmatprep.subr.mxu0 0.0
    %219 = vmatpush2.msra.mxu0 0.0
    %220 = vmatprep.subr.mxu0 0.0
    %221 = vmatpush2.msra.mxu0 0.0
    %222 = vmatprep.subr.mxu0 0.0
    %223 = vmatpush2.msra.mxu0 0.0
    %224 = vmatprep.subr.mxu0 0.0
    %225 = vmatpush2.msra.mxu0 0.0
    %226 = vmatprep.mubr.f32.mxu0 0.0
    %227 = vmatmul.mubr.f32.gmra.mxu0 %v138
    %v228 = vpop.f32.mrf.mxu0
    %v229 = vadd.f32 %v160, %v228
    %v230 = vpop.f32.mrf.mxu0
    %231 = vdwg.mxu0
    %v232 = vtanh.pop %v229
    %v233 = vld [vmem:[%s6] sm:$0xff]
    %v234 = vld [vmem:[%s6 + $0x8] sm:$0xff]
    %v235 = vld [vmem:[%s6 + $0x10] sm:$0xff]
    %v236 = vld [vmem:[%s6 + $0x18] sm:$0xff]
    %v237 = vld [vmem:[%s6 + $0x20] sm:$0xff]
    %v238 = vld [vmem:[%s6 + $0x28] sm:$0xff]
    %v239 = vld [vmem:[%s6 + $0x30] sm:$0xff]
    %v240 = vld [vmem:[%s6 + $0x38] sm:$0xff]
    %v241 = vld [vmem:[%s6 + $0x40] sm:$0xff]
    %v242 = vld [vmem:[%s6 + $0x48] sm:$0xff]
    %v243 = vld [vmem:[%s6 + $0x50] sm:$0xff]
    %v244 = vld [vmem:[%s6 + $0x58] sm:$0xff]
    %v245 = vld [vmem:[%s6 + $0x60] sm:$0xff]
    %v246 = vld [vmem:[%s6 + $0x68] sm:$0xff]
    %v247 = vld [vmem:[%s6 + $0x70] sm:$0xff]
    %v248 = vld [vmem:[%s6 + $0x78] sm:$0xff]
    %v249 = vld [vmem:[%s7] sm:$0x1]
    %v251 = vlaneseq
    %v252 = vshrl.u32 %v251, 7
    %v253 = vsub.s32 0, %v252
    %v254 = vrot.slane %v249, %v253
    %256 = vmatprep.subr.mxu0 0.0
    %257 = vmatpush1.msra.mxu0 %v248
    %258 = vmatprep.subr.mxu0 0.0
    %259 = vmatpush1.msra.mxu0 %v247
    %260 = vmatprep.subr.mxu0 0.0
    %261 = vmatpush1.msra.mxu0 %v246
    %262 = vmatprep.subr.mxu0 0.0
    %263 = vmatpush1.msra.mxu0 %v245
    %264 = vmatprep.subr.mxu0 0.0
    %265 = vmatpush1.msra.mxu0 %v244
    %266 = vmatprep.subr.mxu0 0.0
    %267 = vmatpush1.msra.mxu0 %v243
    %268 = vmatprep.subr.mxu0 0.0
    %269 = vmatpush1.msra.mxu0 %v242
    %270 = vmatprep.subr.mxu0 0.0
    %271 = vmatpush1.msra.mxu0 %v241
    %272 = vmatprep.subr.mxu0 0.0
    %273 = vmatpush1.msra.mxu0 %v240
    %274 = vmatprep.subr.mxu0 0.0
    %275 = vmatpush1.msra.mxu0 %v239
    %276 = vmatprep.subr.mxu0 0.0
    %277 = vmatpush1.msra.mxu0 %v238
    %278 = vmatprep.subr.mxu0 0.0
    %279 = vmatpush1.msra.mxu0 %v237
    %280 = vmatprep.subr.mxu0 0.0
    %281 = vmatpush1.msra.mxu0 %v236
    %282 = vmatprep.subr.mxu0 0.0
    %283 = vmatpush1.msra.mxu0 %v235
    %284 = vmatprep.subr.mxu0 0.0
    %285 = vmatpush1.msra.mxu0 %v234
    %286 = vmatprep.subr.mxu0 0.0
    %287 = vmatpush1.msra.mxu0 %v233
    %288 = vmatprep.subr.mxu0 0.0
    %289 = vmatpush2.msra.mxu0 0.0
    %290 = vmatprep.subr.mxu0 0.0
    %291 = vmatpush2.msra.mxu0 0.0
    %292 = vmatprep.subr.mxu0 0.0
    %293 = vmatpush2.msra.mxu0 0.0
    %294 = vmatprep.subr.mxu0 0.0
    %295 = vmatpush2.msra.mxu0 0.0
    %296 = vmatprep.subr.mxu0 0.0
    %297 = vmatpush2.msra.mxu0 0.0
    %298 = vmatprep.subr.mxu0 0.0
    %299 = vmatpush2.msra.mxu0 0.0
    %300 = vmatprep.subr.mxu0 0.0
    %301 = vmatpush2.msra.mxu0 0.0
    %302 = vmatprep.subr.mxu0 0.0
    %303 = vmatpush2.msra.mxu0 0.0
    %304 = vmatprep.subr.mxu0 0.0
    %305 = vmatpush2.msra.mxu0 0.0
    %306 = vmatprep.subr.mxu0 0.0
    %307 = vmatpush2.msra.mxu0 0.0
    %308 = vmatprep.subr.mxu0 0.0
    %309 = vmatpush2.msra.mxu0 0.0
    %310 = vmatprep.subr.mxu0 0.0
    %311 = vmatpush2.msra.mxu0 0.0
    %312 = vmatprep.subr.mxu0 0.0
    %313 = vmatpush2.msra.mxu0 0.0
    %314 = vmatprep.subr.mxu0 0.0
    %315 = vmatpush2.msra.mxu0 0.0
    %316 = vmatprep.subr.mxu0 0.0
    %317 = vmatpush2.msra.mxu0 0.0
    %318 = vmatprep.subr.mxu0 0.0
    %319 = vmatpush2.msra.mxu0 0.0
    %320 = vmatprep.mubr.f32.mxu0 0.0
    %321 = vmatmul.mubr.f32.gmra.mxu0 %v232
    %v322 = vpop.f32.mrf.mxu0
    %v323 = vadd.f32 %v254, %v322
    %v324 = vpop.f32.mrf.mxu0
    %325 = vdwg.mxu0
    %v326 = vld [vmem:[%s1] sm:$0xf]
    %v327 = vmul.f32 %v326, %v323
    %v328 = vmax.f32 %v327, 0.0
    %v329 = vand.u32 2147483647, %v327
    %v330 = vsub.f32 0.0, %v329
    %v331 = vmul.f32 %v330, 1.442695
    %v332 = vpow.pop %v331
    %v333 = vadd.f32 %v332, 1.0
    %v334 = vlog2.pop %v333
    %v335 = vmul.f32 %v334, 0.6931472
    %v336 = vadd.f32 %v328, %v335
    %vm337 = vcmask 257024
    %v338 = vsel %vm337, %v336, 0.0
    %339 = vadd.xlane.f32.xlu0 %v338
    %v340 = vpop.xlane.xlu0 %339
    %v341 = vrot.slane %v340, 4
    %v342 = vadd.f32 %v340, %v341
    %v343 = vrot.slane %v342, 2
    %v344 = vadd.f32 %v342, %v343
    %v345 = vrot.slane %v344, 1
    %v346 = vadd.f32 %v344, %v345
    %s347 = vtos %v346
    %v348 = vstv %s347
    %349 = vst [vmem:[#allocation5] sm:$0xff] %v348
    // Predicated region
    $region38: #{tpu_custom_call.1} parent=1 // pred_check
      _
    $region39: #{tpu_custom_call.1} parent=1 // pred_check_branch
      %351 = sbr.rel (0) target = $region41
    $region40: #{tpu_custom_call.1} parent=1 // pred_region
      %s353 = ssub.s32 128, 128
      %354 = vsyncadd [#allocation4], %s353
      %s356 = sshll.u32 [#allocation5], 4
      %s357 = int_to_ptr.vmem [resolvable:$true] %s356
      %359 = dma.vmem_to_hbm [thread:$0]  %s357, 128, %s8, [#allocation4]
    $region41: #{tpu_custom_call.1} parent=1 // pred_fallthru
      _
    // Predicated region
    $region42: #{tpu_custom_call.1} parent=1 // pred_check
      _
    $region43: #{tpu_custom_call.1} parent=1 // pred_check_branch
      %361 = sbr.rel (0) target = $region45
    $region44: #{tpu_custom_call.1} parent=1 // pred_region
      %362 = dma.done [#allocation4], 128
    $region45: #{tpu_custom_call.1} parent=1 // pred_fallthru
      _
    %363 = vsyncpa [#allocation3], 1
    %364 = vsyncpa [#allocation4], 1

</llo_original>
